<compile_context>
chip_gen: v7x
topology: tpu7x:2x2x1
jax: 0.10.0
libtpu: 0.0.40
codegen_flags: <defaults>
</compile_context>

<pallas_src>
import jax
import jax.numpy as jnp
from jax.experimental import pallas as pl
from jax.experimental.pallas import tpu as pltpu


def _round_up(x, m):
    return ((x + m - 1) // m) * m


# ----------------------------------------------------------------------------
# Kernels (concat fused: cnn_out / command / speed are separate refs)
# ----------------------------------------------------------------------------
def _critic_kernel(cnn_ref, cmd_ref, spd_ref, w_cnn_ref, w_cmd_ref, sb_ref, o_ref):
    # cnn: [TB,512], cmd: [TB,3], spd: [TB,1]
    # w_cnn: [1,512] (row of the Linear weight), w_cmd: [1,3]
    # sb (SMEM f32[2]): [w_speed, bias]
    # N=1 head -> VPU multiply + lane reduction (MXU would be <1% utilized).
    acc = jnp.sum(cnn_ref[...] * w_cnn_ref[...], axis=-1, keepdims=True)
    acc = acc + jnp.sum(cmd_ref[...] * w_cmd_ref[...], axis=-1, keepdims=True)
    o_ref[...] = acc + spd_ref[...] * sb_ref[0] + sb_ref[1]


def _critic_branched_kernel(cnn_ref, cmd_ref, spd_ref, w_cnn_ref, wb_ref, o_ref):
    # cnn: [TB,512], cmd: [TB,3], spd: [TB,1]
    # w_cnn: [512,3], wb: [2,3] = [[w_speed_row],[bias_row]]
    values = jnp.dot(cnn_ref[...], w_cnn_ref[...],
                     preferred_element_type=jnp.float32)            # [TB,3]
    values = values + spd_ref[...] * wb_ref[0:1, :] + wb_ref[1:2, :]
    # command-weighted reduction over the 3 branch heads
    o_ref[...] = jnp.sum(cmd_ref[...] * values, axis=-1, keepdims=True)


# ----------------------------------------------------------------------------
# Wrapper
# ----------------------------------------------------------------------------
_TB_MAX = 1024  # 1024 rows x 512 f32 = 2 MiB per cnn block; v7x-safe with double buffering


def critic_forward(cnn_out, command, speed, w, b, branched=False, tb_max=_TB_MAX):
    """Pallas equivalent of Critic.forward.

    w, b use the PyTorch Linear layout:
      branched=False: w [1, 516] over features [cnn(512), command(3), speed(1)], b [1]
      branched=True : w [3, 513] over features [cnn(512), speed(1)],             b [3]
    """
    cnn_out = cnn_out.astype(jnp.float32)
    command = command.astype(jnp.float32)
    speed = speed.astype(jnp.float32)
    w = w.astype(jnp.float32)
    b = b.astype(jnp.float32)

    B = cnn_out.shape[0]
    TB = min(tb_max, _round_up(B, 8))
    Bp = _round_up(B, TB)
    if Bp != B:  # ragged last tile: pad batch, slice result
        pad = ((0, Bp - B), (0, 0))
        cnn_out = jnp.pad(cnn_out, pad)
        command = jnp.pad(command, pad)
        speed = jnp.pad(speed, pad)

    grid = (Bp // TB,)
    row_spec = lambda ncol: pl.BlockSpec((TB, ncol), lambda i: (i, 0))
    const_spec = lambda shape: pl.BlockSpec(shape, lambda i: (0, 0))
    out_spec = pl.BlockSpec((TB, 1), lambda i: (i, 0))
    cparams = pltpu.CompilerParams(dimension_semantics=("parallel",))
    cost = pl.CostEstimate(
        flops=2 * Bp * (512 * (3 if branched else 1) + 8),
        transcendentals=0,
        bytes_accessed=Bp * (512 + 3 + 1 + 1) * 4,
    )

    if branched:
        w_cnn = w[:, :512].T                      # [512, 3]
        wb = jnp.stack([w[:, 512], b], axis=0)    # [2, 3] = [w_speed_row; bias_row]
        out = pl.pallas_call(
            _critic_branched_kernel,
            out_shape=jax.ShapeDtypeStruct((Bp, 1), jnp.float32),
            grid=grid,
            in_specs=[
                row_spec(512), row_spec(3), row_spec(1),
                const_spec((512, 3)), const_spec((2, 3)),
            ],
            out_specs=out_spec,
            compiler_params=cparams,
            cost_estimate=cost,
        )(cnn_out, command, speed, w_cnn, wb)
    else:
        w_cnn_row = w[:, :512]                    # [1, 512]
        w_cmd_row = w[:, 512:515]                 # [1, 3]
        sb = jnp.concatenate([w[:, 515], b])      # [2] = [w_speed, bias]
        out = pl.pallas_call(
            _critic_kernel,
            out_shape=jax.ShapeDtypeStruct((Bp, 1), jnp.float32),
            grid=grid,
            in_specs=[
                row_spec(512), row_spec(3), row_spec(1),
                const_spec((1, 512)), const_spec((1, 3)),
                pl.BlockSpec(memory_space=pltpu.MemorySpace.SMEM),
            ],
            out_specs=out_spec,
            compiler_params=cparams,
            cost_estimate=cost,
        )(cnn_out, command, speed, w_cnn_row, w_cmd_row, sb)

    return out[:B]


def init_params(key, branched=False):
    """layer_init equivalent: orthogonal weight (std=1), bias=0 (PyTorch [out,in] layout)."""
    if branched:
        out_dim, in_dim = 3, 512 + 1
    else:
        out_dim, in_dim = 1, 512 + 3 + 1
    w = jax.nn.initializers.orthogonal(scale=1.0)(key, (out_dim, in_dim), jnp.float32)
    b = jnp.zeros((out_dim,), jnp.float32)
    return w, b


def _reference(cnn_out, command, speed, w, b, branched):
    if branched:
        feats = jnp.concatenate([cnn_out, speed], axis=1)
        values = feats @ w.T + b
        return (command[:, 0:1] * values[:, 0:1]
                + command[:, 1:2] * values[:, 1:2]
                + command[:, 2:3] * values[:, 2:3])
    feats = jnp.concatenate([cnn_out, command, speed], axis=1)
    return feats @ w.T + b


# ----------------------------------------------------------------------------
# Main
# ----------------------------------------------------------------------------
if __name__ == "__main__":
    key = jax.random.PRNGKey(0)
    k_cnn, k_cmd, k_spd, k_w0, k_w1 = jax.random.split(key, 5)

    for B in (8, 11):  # 11 exercises the ragged / padded batch-tile path
        cnn_out = jax.random.normal(k_cnn, (B, 512), jnp.float32)
        command = jax.random.normal(k_cmd, (B, 3), jnp.float32)
        speed = jax.random.normal(k_spd, (B, 1), jnp.float32)

        # --- non-branched head (default) ---
        w0, b0 = init_params(k_w0, branched=False)
        b0 = b0 + 0.5  # nonzero bias only to exercise the bias path in the check
        out = jax.block_until_ready(
            critic_forward(cnn_out, command, speed, w0, b0, branched=False))
        ref = _reference(cnn_out, command, speed, w0, b0, branched=False)
        assert out.shape == (B, 1)
        assert jnp.allclose(out, ref, atol=1e-4, rtol=1e-4)

        # --- branched head ---
        w1, b1 = init_params(k_w1, branched=True)
        b1 = b1 + jnp.array([0.1, -0.2, 0.3], jnp.float32)
        out_b = jax.block_until_ready(
            critic_forward(cnn_out, command, speed, w1, b1, branched=True))
        ref_b = _reference(cnn_out, command, speed, w1, b1, branched=True)
        assert out_b.shape == (B, 1)
        assert jnp.allclose(out_b, ref_b, atol=1e-4, rtol=1e-4)

    print("KERNEL_OK")
</pallas_src>

<mosaic_0001>
module attributes {stable_mosaic.version = 11 : i64} {
  func.func @_critic_kernel(%arg0: i32, %arg1: memref<8x512xf32, #tpu.memory_space<vmem>>, %arg2: memref<8x3xf32, #tpu.memory_space<vmem>>, %arg3: memref<8x1xf32, #tpu.memory_space<vmem>>, %arg4: memref<1x512xf32, #tpu.memory_space<vmem>>, %arg5: memref<1x3xf32, #tpu.memory_space<vmem>>, %arg6: memref<2xf32, #tpu.memory_space<smem>>, %arg7: memref<8x1xf32, #tpu.memory_space<vmem>>) attributes {dimension_semantics = [#tpu.dimension_semantics<parallel>], iteration_bounds = array<i64: 1>, scalar_prefetch = 0 : i64, scratch_operands = 0 : i64, tpu.core_type = #tpu.core_type<tc>, window_params = [{transform_indices = @transform_0, window_bounds = array<i64: 8, 512>}, {transform_indices = @transform_1, window_bounds = array<i64: 8, 3>}, {transform_indices = @transform_2, window_bounds = array<i64: 8, 1>}, {pipeline_mode = #tpu.pipeline_mode<synchronous>, transform_indices = @transform_3, window_bounds = array<i64: 1, 512>}, {pipeline_mode = #tpu.pipeline_mode<synchronous>, transform_indices = @transform_4, window_bounds = array<i64: 1, 3>}, {transform_indices = @transform_5, window_bounds = array<i64: 2>}, {transform_indices = @transform_6, window_bounds = array<i64: 8, 1>}]} {
    %c0 = arith.constant 0 : index
    %c0_0 = arith.constant 0 : index
    %0 = vector.load %arg1[%c0, %c0_0] : memref<8x512xf32, #tpu.memory_space<vmem>>, vector<8x512xf32>
    %c0_1 = arith.constant 0 : index
    %c0_2 = arith.constant 0 : index
    %1 = vector.load %arg4[%c0_1, %c0_2] : memref<1x512xf32, #tpu.memory_space<vmem>>, vector<1x512xf32>
    %2 = vector.broadcast %1 : vector<1x512xf32> to vector<8x512xf32>
    %3 = arith.mulf %0, %2 : vector<8x512xf32>
    %cst = arith.constant dense<0.000000e+00> : vector<8xf32>
    %4 = vector.multi_reduction <add>, %3, %cst [1] : vector<8x512xf32> to vector<8xf32>
    %5 = vector.shape_cast %4 : vector<8xf32> to vector<8x1xf32>
    %c0_3 = arith.constant 0 : index
    %c0_4 = arith.constant 0 : index
    %6 = vector.load %arg2[%c0_3, %c0_4] : memref<8x3xf32, #tpu.memory_space<vmem>>, vector<8x3xf32>
    %c0_5 = arith.constant 0 : index
    %c0_6 = arith.constant 0 : index
    %7 = vector.load %arg5[%c0_5, %c0_6] : memref<1x3xf32, #tpu.memory_space<vmem>>, vector<1x3xf32>
    %8 = vector.broadcast %7 : vector<1x3xf32> to vector<8x3xf32>
    %9 = arith.mulf %6, %8 : vector<8x3xf32>
    %cst_7 = arith.constant dense<0.000000e+00> : vector<8xf32>
    %10 = vector.multi_reduction <add>, %9, %cst_7 [1] : vector<8x3xf32> to vector<8xf32>
    %11 = vector.shape_cast %10 : vector<8xf32> to vector<8x1xf32>
    %12 = arith.addf %5, %11 : vector<8x1xf32>
    %c0_8 = arith.constant 0 : index
    %c0_9 = arith.constant 0 : index
    %13 = vector.load %arg3[%c0_8, %c0_9] : memref<8x1xf32, #tpu.memory_space<vmem>>, vector<8x1xf32>
    %c0_10 = arith.constant 0 : index
    %14 = memref.load %arg6[%c0_10] : memref<2xf32, #tpu.memory_space<smem>>
    %15 = vector.broadcast %14 : f32 to vector<8x1xf32>
    %16 = arith.mulf %13, %15 : vector<8x1xf32>
    %17 = arith.addf %12, %16 : vector<8x1xf32>
    %c1 = arith.constant 1 : index
    %18 = memref.load %arg6[%c1] : memref<2xf32, #tpu.memory_space<smem>>
    %19 = vector.broadcast %18 : f32 to vector<8x1xf32>
    %20 = arith.addf %17, %19 : vector<8x1xf32>
    %c0_11 = arith.constant 0 : index
    %c0_12 = arith.constant 0 : index
    %21 = vector.load %arg7[%c0_11, %c0_12] : memref<8x1xf32, #tpu.memory_space<vmem>>, vector<8x1xf32>
    tpu.vector_store %arg7[%c0_11, %c0_12], %20 {strides = array<i32>} : memref<8x1xf32, #tpu.memory_space<vmem>>, vector<8x1xf32>,
    return
  }
  func.func @transform_0(%arg0: i32) -> (i32, i32) {
    %c0_i32 = arith.constant 0 : i32
    %c0_i32_0 = arith.constant 0 : i32
    return %arg0, %c0_i32 : i32, i32
  }
  func.func @transform_1(%arg0: i32) -> (i32, i32) {
    %c0_i32 = arith.constant 0 : i32
    %c0_i32_0 = arith.constant 0 : i32
    return %arg0, %c0_i32 : i32, i32
  }
  func.func @transform_2(%arg0: i32) -> (i32, i32) {
    %c0_i32 = arith.constant 0 : i32
    %c0_i32_0 = arith.constant 0 : i32
    return %arg0, %c0_i32 : i32, i32
  }
  func.func @transform_3(%arg0: i32) -> (i32, i32) {
    %c0_i32 = arith.constant 0 : i32
    %c0_i32_0 = arith.constant 0 : i32
    %c0_i32_1 = arith.constant 0 : i32
    return %c0_i32, %c0_i32_0 : i32, i32
  }
  func.func @transform_4(%arg0: i32) -> (i32, i32) {
    %c0_i32 = arith.constant 0 : i32
    %c0_i32_0 = arith.constant 0 : i32
    %c0_i32_1 = arith.constant 0 : i32
    return %c0_i32, %c0_i32_0 : i32, i32
  }
  func.func @transform_5(%arg0: i32) -> i32 {
    %c0_i32 = arith.constant 0 : i32
    %c0_i32_0 = arith.constant 0 : i32
    return %c0_i32 : i32
  }
  func.func @transform_6(%arg0: i32) -> (i32, i32) {
    %c0_i32 = arith.constant 0 : i32
    %c0_i32_0 = arith.constant 0 : i32
    return %arg0, %c0_i32 : i32, i32
  }
}

</mosaic_0001>

<llo_original>
// kernel: tpu_custom_call.1
$region0: #{tpu_custom_call.1}
  #allocation0 [shape = 'u32[]', space=smem, size = 0x4, offset = 0x4, fixed_abs, tag = 'smem constant byte address 0x4 - core index']
  #allocation1 [shape = 'u32[144,128]{1,0:T(1,128)}', space=vmem, size = 0x12000, scoped, tag = 'internal scratch']
  %s0 = inlined_call_operand.hbm [shape: f32[8,512], index: 0, kind: input, shape index: {}]
  %s1 = inlined_call_operand.vmem [shape: f32[8,3], index: 1, kind: input, shape index: {}]
  %s2 = inlined_call_operand.vmem [shape: f32[8,1], index: 2, kind: input, shape index: {}]
  %s3 = inlined_call_operand.vmem [shape: f32[1,512], index: 3, kind: input, shape index: {}]
  %s4 = inlined_call_operand.vmem [shape: f32[1,3], index: 4, kind: input, shape index: {}]
  %s5 = inlined_call_operand.vmem [shape: f32[2], index: 5, kind: input, shape index: {}]
  %s6 = inlined_call_operand.vmem [shape: f32[8,1], index: 6, kind: output, shape index: {}]
  %s7 = sld [smem:[#allocation0]]
  $region42: #{tpu_custom_call.1} parent=0
    _
  %s9 = ssub.s32 1, %s7
  %s10 = scalar_select 0, %s9, %s7
  $region1: #{tpu_custom_call.1} parent=0
    #allocation2 [shape = 'u8[16384]{0}', space=vmem, size = 0x4000, scoped, tag = 'input window, operand 0, single buffered']
    #allocation3 [shape = 's32[1]{0}', space=sflag, size = 0x4, scoped, tag = 'scoped memory for tpu_custom_call.1']
    #allocation4 [shape = 's32[1]{0}', space=sflag, size = 0x4, scoped, tag = 'scoped memory for tpu_custom_call.1']
    #allocation5 [shape = 'u8[512]{0}', space=smem, size = 0x200, scoped, tag = 'input window, operand 5, single buffered']
    %11 = vsyncpa [#allocation3], 0
    %12 = vsyncpa [#allocation4], 0
    // Predicated region
    $region2: #{tpu_custom_call.1} parent=1 // pred_check
      _
    $region3: #{tpu_custom_call.1} parent=1 // pred_check_branch
      %14 = sbr.rel (0) target = $region5
    $region4: #{tpu_custom_call.1} parent=1 // pred_region
      %s16 = ssub.s32 512, 512
      %17 = vsyncadd [#allocation3], %s16
      %s19 = sshll.u32 [#allocation2], 4
      %s20 = int_to_ptr.vmem [resolvable:$true] %s19
      %22 = dma.hbm_to_vmem [thread:$0]  %s0, 512, %s20, [#allocation3]
    $region5: #{tpu_custom_call.1} parent=1 // pred_fallthru
      _
    // Predicated region
    $region6: #{tpu_custom_call.1} parent=1 // pred_check
      _
    $region7: #{tpu_custom_call.1} parent=1 // pred_check_branch
      %24 = sbr.rel (0) target = $region9
    $region8: #{tpu_custom_call.1} parent=1 // pred_region
      _
    $region9: #{tpu_custom_call.1} parent=1 // pred_fallthru
      _
    // Predicated region
    $region10: #{tpu_custom_call.1} parent=1 // pred_check
      _
    $region11: #{tpu_custom_call.1} parent=1 // pred_check_branch
      %26 = sbr.rel (0) target = $region13
    $region12: #{tpu_custom_call.1} parent=1 // pred_region
      _
    $region13: #{tpu_custom_call.1} parent=1 // pred_fallthru
      _
    // Predicated region
    $region14: #{tpu_custom_call.1} parent=1 // pred_check
      _
    $region15: #{tpu_custom_call.1} parent=1 // pred_check_branch
      %28 = sbr.rel (0) target = $region17
    $region16: #{tpu_custom_call.1} parent=1 // pred_region
      _
    $region17: #{tpu_custom_call.1} parent=1 // pred_fallthru
      _
    // Predicated region
    $region18: #{tpu_custom_call.1} parent=1 // pred_check
      _
    $region19: #{tpu_custom_call.1} parent=1 // pred_check_branch
      %30 = sbr.rel (0) target = $region21
    $region20: #{tpu_custom_call.1} parent=1 // pred_region
      _
    $region21: #{tpu_custom_call.1} parent=1 // pred_fallthru
      _
    // Predicated region
    $region22: #{tpu_custom_call.1} parent=1 // pred_check
      _
    $region23: #{tpu_custom_call.1} parent=1 // pred_check_branch
      %32 = sbr.rel (0) target = $region25
    $region24: #{tpu_custom_call.1} parent=1 // pred_region
      %s34 = ssub.s32 16, 16
      %35 = vsyncadd [#allocation4], %s34
      %s37 = sshll.u32 %s5, 4
      %s38 = int_to_ptr.vmem [resolvable:$true] %s37
      %40 = dma.vmem_to_smem %s38, 16, [#allocation5], [#allocation4]
    $region25: #{tpu_custom_call.1} parent=1 // pred_fallthru
      _
    // Predicated region
    $region26: #{tpu_custom_call.1} parent=1 // pred_check
      _
    $region27: #{tpu_custom_call.1} parent=1 // pred_check_branch
      %42 = sbr.rel (0) target = $region29
    $region28: #{tpu_custom_call.1} parent=1 // pred_region
      %43 = dma.done [#allocation3], 512
    $region29: #{tpu_custom_call.1} parent=1 // pred_fallthru
      _
    // Predicated region
    $region30: #{tpu_custom_call.1} parent=1 // pred_check
      _
    $region31: #{tpu_custom_call.1} parent=1 // pred_check_branch
      %45 = sbr.rel (0) target = $region33
    $region32: #{tpu_custom_call.1} parent=1 // pred_region
      %46 = dma.done [#allocation4], 16
    $region33: #{tpu_custom_call.1} parent=1 // pred_fallthru
      _
    %47 = sfence
    %v48 = vld [vmem:[#allocation2] sm:$0xff]
    %v49 = vld [vmem:[#allocation2 + $0x8] sm:$0xff]
    %v50 = vld [vmem:[#allocation2 + $0x10] sm:$0xff]
    %v51 = vld [vmem:[#allocation2 + $0x18] sm:$0xff]
    %v52 = vld [vmem:[%s3] sm:$0xf]
    %v54 = vlaneseq
    %v55 = vshrl.u32 %v54, 7
    %v56 = vsub.s32 0, %v55
    %v57 = vrot.slane %v52, %v56
    %v58 = vlaneseq
    %v59 = vshrl.u32 %v58, 7
    %v60 = vsub.s32 1, %v59
    %v61 = vrot.slane %v52, %v60
    %v62 = vlaneseq
    %v63 = vshrl.u32 %v62, 7
    %v64 = vsub.s32 2, %v63
    %v65 = vrot.slane %v52, %v64
    %v66 = vlaneseq
    %v67 = vshrl.u32 %v66, 7
    %v68 = vsub.s32 3, %v67
    %v69 = vrot.slane %v52, %v68
    %v74 = vmul.f32 %v48, %v57
    %v75 = vmul.f32 %v49, %v61
    %v76 = vmul.f32 %v50, %v65
    %v77 = vmul.f32 %v51, %v69
    %v78 = vadd.f32 %v74, %v75
    %v79 = vadd.f32 %v78, %v76
    %v80 = vadd.f32 %v79, %v77
    %81 = vadd.xlane.f32.xlu0 %v80
    %v82 = vpop.xlane.xlu0 %81
    %v83 = vld [vmem:[%s1] sm:$0xff]
    %v84 = vld [vmem:[%s4] sm:$0x1]
    %v86 = vlaneseq
    %v87 = vshrl.u32 %v86, 7
    %v88 = vsub.s32 0, %v87
    %v89 = vrot.slane %v84, %v88
    %v91 = vmul.f32 %v83, %v89
    %vm92 = vcmask 23552
    %v93 = vsel %vm92, %v91, 0.0
    %94 = vadd.xlane.f32.xlu0 %v93
    %v95 = vpop.xlane.xlu0 %94
    %v96 = vadd.f32 %v82, %v95
    %v97 = vld [vmem:[%s2] sm:$0xff]
    %s98 = sld [smem:[#allocation5]]
    %v99 = vstv %s98
    %v100 = vmul.f32 %v97, %v99
    %v101 = vadd.f32 %v96, %v100
    %s102 = sld [smem:[#allocation5 + $0x1]]
    %v103 = vstv %s102
    %v104 = vadd.f32 %v101, %v103
    %vm105 = vcmask 7168
    %106 = vst.msk [vmem:[%s6] sm:$0xff] %vm105, %v104
    // Predicated region
    $region34: #{tpu_custom_call.1} parent=1 // pred_check
      _
    $region35: #{tpu_custom_call.1} parent=1 // pred_check_branch
      %108 = sbr.rel (0) target = $region37
    $region36: #{tpu_custom_call.1} parent=1 // pred_region
      _
    $region37: #{tpu_custom_call.1} parent=1 // pred_fallthru
      _
    // Predicated region
    $region38: #{tpu_custom_call.1} parent=1 // pred_check
      _
    $region39: #{tpu_custom_call.1} parent=1 // pred_check_branch
      %110 = sbr.rel (0) target = $region41
    $region40: #{tpu_custom_call.1} parent=1 // pred_region
      _
    $region41: #{tpu_custom_call.1} parent=1 // pred_fallthru
      _
    %111 = vsyncpa [#allocation3], 1
    %112 = vsyncpa [#allocation4], 1

</llo_original>
